<compile_context>
chip_gen: v7x
topology: tpu7x:2x2x1
jax: 0.10.0
libtpu: 0.0.40
codegen_flags: <defaults>
</compile_context>

<pallas_src>
import functools

import numpy as np
import jax
import jax.numpy as jnp
from jax import lax
from jax.experimental import pallas as pl
from jax.experimental.pallas import tpu as pltpu


# ----------------------------------------------------------------------------
# Deterministic anchor generation (identical to py-faster-rcnn generate_anchors)
# ----------------------------------------------------------------------------
def _whctrs(anchor):
    w = anchor[2] - anchor[0] + 1
    h = anchor[3] - anchor[1] + 1
    x_ctr = anchor[0] + 0.5 * (w - 1)
    y_ctr = anchor[1] + 0.5 * (h - 1)
    return w, h, x_ctr, y_ctr


def _mkanchors(ws, hs, x_ctr, y_ctr):
    ws = ws[:, np.newaxis]
    hs = hs[:, np.newaxis]
    return np.hstack((x_ctr - 0.5 * (ws - 1), y_ctr - 0.5 * (hs - 1),
                      x_ctr + 0.5 * (ws - 1), y_ctr + 0.5 * (hs - 1)))


def _ratio_enum(anchor, ratios):
    w, h, x_ctr, y_ctr = _whctrs(anchor)
    size = w * h
    size_ratios = size / ratios
    ws = np.round(np.sqrt(size_ratios))
    hs = np.round(ws * ratios)
    return _mkanchors(ws, hs, x_ctr, y_ctr)


def _scale_enum(anchor, scales):
    w, h, x_ctr, y_ctr = _whctrs(anchor)
    ws = w * scales
    hs = h * scales
    return _mkanchors(ws, hs, x_ctr, y_ctr)


def generate_anchors(base_size=16, ratios=np.array([0.5, 1, 2]),
                     scales=2 ** np.arange(3, 6)):
    base_anchor = np.array([1, 1, base_size, base_size], dtype=np.float64) - 1
    ratio_anchors = _ratio_enum(base_anchor, ratios)
    anchors = np.vstack([_scale_enum(ratio_anchors[i, :], scales)
                         for i in range(ratio_anchors.shape[0])])
    return anchors


# ----------------------------------------------------------------------------
# Config (in-script, deterministic; small topN for the synthetic test)
# ----------------------------------------------------------------------------
cfg = {"TEST": dict(RPN_PRE_NMS_TOP_N=128, RPN_POST_NMS_TOP_N=16,
                    RPN_NMS_THRESH=0.7)}


def _round_up(x, m):
    return ((x + m - 1) // m) * m


# ----------------------------------------------------------------------------
# Tiling helpers
# ----------------------------------------------------------------------------
def _nms_pad_and_tile(M):
    """Pad the pre-NMS box count and pick a square mask tile.

    Largest tile in {1024,512,256,128} whose padding overhead stays <= 12.5%
    per axis -> few grid steps at production pre_nms_topN, no inflation at
    toy sizes."""
    base = _round_up(max(M, 128), 128)
    for tile in (1024, 512, 256, 128):
        m_pad = _round_up(base, tile)
        if m_pad * 8 <= base * 9:
            return m_pad, tile
    return base, 128


def _nms_row_col_tiles(B, m_pad, tile):
    row_tile, col_tile = tile, tile
    # v7x dual TensorCore: guarantee >= 2 grid steps.
    if B * (m_pad // row_tile) * (m_pad // col_tile) < 2 and m_pad // 2 >= 8:
        row_tile = m_pad // 2          # m_pad is a multiple of 128 -> ok (÷8)
    return row_tile, col_tile


def _decode_tile(B, m_pad):
    tile = next(t for t in (1024, 512, 256, 128) if m_pad % t == 0)
    # v7x dual TensorCore: prefer >= 2 grid steps when the lane extent allows.
    if B * (m_pad // tile) < 2 and m_pad % 256 == 0:
        tile = tile // 2
    return tile


# ----------------------------------------------------------------------------
# Pallas kernel 1: bbox_transform_inv + clip_boxes on the top-M boxes.
#   anchors / deltas: component-major blocks (1, 4, T) [x1,y1,x2,y2]/[dx,dy,dw,dh]
# ----------------------------------------------------------------------------
def _decode_clip_kernel(im_ref, anc_ref, dlt_ref, out_ref):
    ax1 = anc_ref[:, 0:1, :]
    ay1 = anc_ref[:, 1:2, :]
    ax2 = anc_ref[:, 2:3, :]
    ay2 = anc_ref[:, 3:4, :]
    dx = dlt_ref[:, 0:1, :]
    dy = dlt_ref[:, 1:2, :]
    dw = dlt_ref[:, 2:3, :]
    dh = dlt_ref[:, 3:4, :]

    widths = ax2 - ax1 + 1.0
    heights = ay2 - ay1 + 1.0
    ctr_x = ax1 + 0.5 * widths
    ctr_y = ay1 + 0.5 * heights

    pred_ctr_x = dx * widths + ctr_x
    pred_ctr_y = dy * heights + ctr_y
    pred_w = jnp.exp(dw) * widths
    pred_h = jnp.exp(dh) * heights

    im_h = im_ref[0]
    im_w = im_ref[1]

    x1 = jnp.clip(pred_ctr_x - 0.5 * pred_w, 0.0, im_w - 1.0)
    y1 = jnp.clip(pred_ctr_y - 0.5 * pred_h, 0.0, im_h - 1.0)
    x2 = jnp.clip(pred_ctr_x + 0.5 * pred_w, 0.0, im_w - 1.0)
    y2 = jnp.clip(pred_ctr_y + 0.5 * pred_h, 0.0, im_h - 1.0)

    out_ref[:, 0:1, :] = x1
    out_ref[:, 1:2, :] = y1
    out_ref[:, 2:3, :] = x2
    out_ref[:, 3:4, :] = y2


def decode_and_clip(anchors_cm, deltas_cm, im_hw, tile_n):
    """anchors_cm/deltas_cm: (B, 4, M_pad) f32, im_hw: (2,) f32 -> (B, 4, M_pad)."""
    B, _, m_pad = deltas_cm.shape
    assert m_pad % tile_n == 0
    return pl.pallas_call(
        _decode_clip_kernel,
        out_shape=jax.ShapeDtypeStruct((B, 4, m_pad), jnp.float32),
        grid=(B, m_pad // tile_n),
        in_specs=[
            pl.BlockSpec(memory_space=pltpu.MemorySpace.SMEM),         # im_hw
            pl.BlockSpec((1, 4, tile_n), lambda b, n: (b, 0, n)),      # anchors
            pl.BlockSpec((1, 4, tile_n), lambda b, n: (b, 0, n)),      # deltas
        ],
        out_specs=pl.BlockSpec((1, 4, tile_n), lambda b, n: (b, 0, n)),
        compiler_params=pltpu.CompilerParams(
            dimension_semantics=("parallel", "parallel")),
    )(im_hw, anchors_cm, deltas_cm)


# ----------------------------------------------------------------------------
# Pallas kernel 2: fused-threshold NMS suppression mask (int8), (B, R, C) tiled.
#   bcm block (1, 4, CT): column boxes, component-major (lane-dense).
#   brm block (1, RT, 4): row boxes, row-major (supplies (RT,1) operands
#                         without an in-kernel cross-lane relayout).
#   out block (1, RT, CT) int8: 1 where IoU(row, col) > thresh.
#   Tiles strictly below the diagonal are never read by the greedy sweep
#   (idx > i guard), so their IoU math is skipped entirely.
# ----------------------------------------------------------------------------
def _make_nms_mask_kernel(thresh, row_tile, col_tile):
    thresh = float(thresh)
    one_plus_t = 1.0 + thresh

    def kernel(bcm_ref, brm_ref, mask_ref):
        r = pl.program_id(1)
        c = pl.program_id(2)
        # Tile needed iff its max column index exceeds its min row index.
        needed = (c + 1) * col_tile - 1 > r * row_tile

        @pl.when(needed)
        def _():
            bcm = bcm_ref[0]                         # (4, CT) column boxes
            brm = brm_ref[0]                         # (RT, 4) row boxes
            x1c, y1c = bcm[0:1, :], bcm[1:2, :]      # (1, CT)
            x2c, y2c = bcm[2:3, :], bcm[3:4, :]
            x1r, y1r = brm[:, 0:1], brm[:, 1:2]      # (RT, 1)
            x2r, y2r = brm[:, 2:3], brm[:, 3:4]

            t_area_c = thresh * ((x2c - x1c + 1.0) * (y2c - y1c + 1.0))
            t_area_r = thresh * ((x2r - x1r + 1.0) * (y2r - y1r + 1.0))

            xx1 = jnp.maximum(x1r, x1c)
            yy1 = jnp.maximum(y1r, y1c)
            xx2 = jnp.minimum(x2r, x2c)
            yy2 = jnp.minimum(y2r, y2c)
            w = jnp.maximum(0.0, xx2 - xx1 + 1.0)
            h = jnp.maximum(0.0, yy2 - yy1 + 1.0)
            inter = w * h
            # iou > t  <=>  inter*(1+t) > t*area_r + t*area_c   (no divide,
            # no per-element union / thresh multiply).
            mask_ref[0] = (inter * one_plus_t >
                           (t_area_r + t_area_c)).astype(jnp.int8)

        @pl.when(jnp.logical_not(needed))
        def _():
            mask_ref[...] = jnp.zeros(mask_ref.shape, mask_ref.dtype)

    return kernel


def nms_suppression_mask(boxes_cm, boxes_rm, thresh, row_tile, col_tile):
    """boxes_cm: (B, 4, M_pad), boxes_rm: (B, M_pad, 4) -> int8 (B, M_pad, M_pad)."""
    B, _, m_pad = boxes_cm.shape
    assert m_pad % row_tile == 0 and m_pad % col_tile == 0
    kernel = _make_nms_mask_kernel(thresh, row_tile, col_tile)
    return pl.pallas_call(
        kernel,
        out_shape=jax.ShapeDtypeStruct((B, m_pad, m_pad), jnp.int8),
        grid=(B, m_pad // row_tile, m_pad // col_tile),
        in_specs=[
            pl.BlockSpec((1, 4, col_tile), lambda b, r, c: (b, 0, c)),
            pl.BlockSpec((1, row_tile, 4), lambda b, r, c: (b, r, 0)),
        ],
        out_specs=pl.BlockSpec((1, row_tile, col_tile),
                               lambda b, r, c: (b, r, c)),
        compiler_params=pltpu.CompilerParams(
            dimension_semantics=("parallel", "parallel", "parallel")),
    )(boxes_cm, boxes_rm)


# ----------------------------------------------------------------------------
# Greedy NMS sweep + kept-index selection (sequential -> plain JAX, vmapped)
# TODO(synk): fuse into Pallas at production pre_nms_topN to avoid the M^2
#             int8 HBM round-trip and the serialized XLA gather loop.
# ----------------------------------------------------------------------------
def _greedy_select(sup_mat, m_valid, post_n):
    m_pad = sup_mat.shape[0]
    idx = jnp.arange(m_pad)

    def body(i, keep):
        suppress = (sup_mat[i] > 0) & (idx > i) & keep[i]
        return keep & jnp.logical_not(suppress)

    keep = lax.fori_loop(0, m_pad, body, jnp.ones((m_pad,), dtype=bool))
    keep = keep & (idx < m_valid)                     # drop pad boxes
    # kept indices in score-sorted order; non-kept sort to the back
    sort_key = jnp.where(keep, idx, m_pad)
    kept_idx = jnp.argsort(sort_key)[:post_n]
    valid = jnp.arange(post_n) < jnp.sum(keep)
    return kept_idx, valid


# ----------------------------------------------------------------------------
# ProposalLayer
# ----------------------------------------------------------------------------
class ProposalLayer:

    def __init__(self, feat_stride=16, anchor_scales=(8, 16, 32)):
        self._feat_stride = feat_stride
        self._anchors = generate_anchors(
            scales=np.array(anchor_scales)).astype(np.float32)
        self._num_anchors = self._anchors.shape[0]
        self._anchor_cache = {}          # (H, W) -> device-resident (4, N) f32

    def _create_anchors(self, feature_height, feature_width):
        shift_x = np.arange(0, feature_width) * self._feat_stride
        shift_y = np.arange(0, feature_height) * self._feat_stride
        shift_x, shift_y = np.meshgrid(shift_x, shift_y)
        shifts = np.vstack((shift_x.ravel(), shift_y.ravel(),
                            shift_x.ravel(), shift_y.ravel())).transpose()
        A = self._num_anchors
        K = shifts.shape[0]
        all_anchors = (self._anchors.reshape((1, A, 4)) +
                       shifts.reshape((1, K, 4)).transpose((1, 0, 2)))
        return all_anchors.reshape((K * A, 4)).astype(np.float32)

    def _anchors_cm(self, feature_height, feature_width):
        key = (feature_height, feature_width)
        if key not in self._anchor_cache:
            a = self._create_anchors(feature_height, feature_width)   # (N, 4)
            self._anchor_cache[key] = jnp.asarray(a.T, dtype=jnp.float32)
        return self._anchor_cache[key]                                # (4, N)

    def forward(self, scores, bbox_deltas, im_info, cfg_key):
        pre_nms_topN = cfg[cfg_key]["RPN_PRE_NMS_TOP_N"]
        post_nms_topN = cfg[cfg_key]["RPN_POST_NMS_TOP_N"]
        nms_thresh = cfg[cfg_key]["RPN_NMS_THRESH"]

        A = self._num_anchors
        B = scores.shape[0]
        H, W = scores.shape[2], scores.shape[3]
        N = H * W * A

        # foreground scores NCHW -> (B, N)   (n = (h*W + w)*A + a)
        fg = scores[:, A:, :, :]
        scores_flat = jnp.transpose(fg, (0, 2, 3, 1)).reshape(B, N)

        # --- top-M selection FIRST so decode only touches M boxes ---
        # (exact lax.top_k keeps reference semantics; lax.approx_max_k could be
        #  swapped in for very large N if approximate recall is acceptable)
        M = min(pre_nms_topN, N)
        _, order = lax.top_k(scores_flat, M)                         # (B, M)

        # deltas NCHW (channel = a*4 + comp) -> component-major (B, 4, N),
        # lane-axis gather of the top-M columns.
        deltas_cm = jnp.transpose(
            bbox_deltas.reshape(B, A, 4, H, W),
            (0, 2, 3, 4, 1)).reshape(B, 4, N).astype(jnp.float32)
        deltas_top = jnp.take_along_axis(deltas_cm, order[:, None, :], axis=2)

        # memoized device-resident anchors (4, N); gather top-M per batch.
        anchors_cm = self._anchors_cm(H, W)                          # (4, N)
        anchors_top = jnp.transpose(
            jnp.take(anchors_cm, order, axis=1), (1, 0, 2))          # (B, 4, M)

        # pad M up to a lane-dense tileable extent; pad boxes decode to tiny
        # boxes at the origin, sit after all real boxes, and are excluded from
        # the selection, so they never influence the result.
        m_pad, sq_tile = _nms_pad_and_tile(M)
        pad = m_pad - M
        deltas_top = jnp.pad(deltas_top, ((0, 0), (0, 0), (0, pad)))
        anchors_top = jnp.pad(anchors_top, ((0, 0), (0, 0), (0, pad)))

        # reference semantics: im_info[0] clips every batch element
        im_hw = im_info[0, :2].astype(jnp.float32)                   # [h, w]

        # --- Pallas hot path 1: decode + clip the top-M boxes ---
        tile_n = _decode_tile(B, m_pad)
        boxes_cm = decode_and_clip(anchors_top, deltas_top, im_hw, tile_n)
        boxes_rm = jnp.transpose(boxes_cm, (0, 2, 1))                # (B, Mp, 4)

        # --- Pallas hot path 2: fused-threshold suppression mask (int8) ---
        row_tile, col_tile = _nms_row_col_tiles(B, m_pad, sq_tile)
        sup = nms_suppression_mask(boxes_cm, boxes_rm, nms_thresh,
                                   row_tile, col_tile)               # (B, Mp, Mp)

        # --- greedy sweep + selection, vmapped over batch ---
        select = functools.partial(_greedy_select, m_valid=M,
                                   post_n=post_nms_topN)
        kept_idx, valid = jax.vmap(select)(sup)                      # (B, post)

        props_cm = jnp.take_along_axis(
            boxes_cm, kept_idx[:, None, :], axis=2)                  # (B, 4, post)
        props = jnp.transpose(props_cm, (0, 2, 1))                   # (B, post, 4)
        props = jnp.where(valid[:, :, None], props, 0.0)

        # Reference behaviour: batch index fills column 0 for ALL rows, padded
        # rows keep a zero box (downstream consumers should use post-NMS counts).
        batch_col = jnp.broadcast_to(
            jnp.arange(B, dtype=jnp.float32)[:, None, None],
            (B, post_nms_topN, 1))
        output = jnp.concatenate([batch_col, props], axis=2)         # (B, post, 5)
        # TODO(synk): the reference defines _filter_boxes (min-size filter) but
        # never calls it in forward, so it is intentionally omitted here.
        return output


if __name__ == "__main__":
    B, H, W = 2, 8, 8
    layer = ProposalLayer(feat_stride=16, anchor_scales=(8, 16, 32))
    A = layer._num_anchors  # 9

    key = jax.random.PRNGKey(0)
    k1, k2 = jax.random.split(key)
    scores = jax.random.uniform(k1, (B, 2 * A, H, W), dtype=jnp.float32)
    bbox_deltas = 0.1 * jax.random.normal(k2, (B, 4 * A, H, W),
                                          dtype=jnp.float32)
    im_info = jnp.array([[H * 16.0, W * 16.0, 1.0]] * B, dtype=jnp.float32)

    out = layer.forward(scores, bbox_deltas, im_info, "TEST")
    out = jax.block_until_ready(out)
    assert out.shape == (B, cfg["TEST"]["RPN_POST_NMS_TOP_N"], 5)
    assert bool(jnp.all(jnp.isfinite(out)))
    print("KERNEL_OK")
</pallas_src>

<mosaic_0001>
module attributes {stable_mosaic.version = 11 : i64} {
  func.func @_decode_clip_kernel(%arg0: i32, %arg1: i32, %arg2: memref<2xf32, #tpu.memory_space<smem>>, %arg3: memref<1x4x128xf32, #tpu.memory_space<vmem>>, %arg4: memref<1x4x128xf32, #tpu.memory_space<vmem>>, %arg5: memref<1x4x128xf32, #tpu.memory_space<vmem>>) attributes {dimension_semantics = [#tpu.dimension_semantics<parallel>, #tpu.dimension_semantics<parallel>], iteration_bounds = array<i64: 2, 1>, scalar_prefetch = 0 : i64, scratch_operands = 0 : i64, tpu.core_type = #tpu.core_type<tc>, window_params = [{transform_indices = @transform_0, window_bounds = array<i64: 2>}, {transform_indices = @transform_1, window_bounds = array<i64: 1, 4, 128>}, {transform_indices = @transform_2, window_bounds = array<i64: 1, 4, 128>}, {transform_indices = @transform_3, window_bounds = array<i64: 1, 4, 128>}]} {
    %c0 = arith.constant 0 : index
    %c0_0 = arith.constant 0 : index
    %c0_1 = arith.constant 0 : index
    %0 = vector.load %arg3[%c0, %c0_0, %c0_1] : memref<1x4x128xf32, #tpu.memory_space<vmem>>, vector<1x1x128xf32>
    %c0_2 = arith.constant 0 : index
    %c1 = arith.constant 1 : index
    %c0_3 = arith.constant 0 : index
    %1 = vector.load %arg3[%c0_2, %c1, %c0_3] : memref<1x4x128xf32, #tpu.memory_space<vmem>>, vector<1x1x128xf32>
    %c0_4 = arith.constant 0 : index
    %c2 = arith.constant 2 : index
    %c0_5 = arith.constant 0 : index
    %2 = vector.load %arg3[%c0_4, %c2, %c0_5] : memref<1x4x128xf32, #tpu.memory_space<vmem>>, vector<1x1x128xf32>
    %c0_6 = arith.constant 0 : index
    %c3 = arith.constant 3 : index
    %c0_7 = arith.constant 0 : index
    %3 = vector.load %arg3[%c0_6, %c3, %c0_7] : memref<1x4x128xf32, #tpu.memory_space<vmem>>, vector<1x1x128xf32>
    %c0_8 = arith.constant 0 : index
    %c0_9 = arith.constant 0 : index
    %c0_10 = arith.constant 0 : index
    %4 = vector.load %arg4[%c0_8, %c0_9, %c0_10] : memref<1x4x128xf32, #tpu.memory_space<vmem>>, vector<1x1x128xf32>
    %c0_11 = arith.constant 0 : index
    %c1_12 = arith.constant 1 : index
    %c0_13 = arith.constant 0 : index
    %5 = vector.load %arg4[%c0_11, %c1_12, %c0_13] : memref<1x4x128xf32, #tpu.memory_space<vmem>>, vector<1x1x128xf32>
    %c0_14 = arith.constant 0 : index
    %c2_15 = arith.constant 2 : index
    %c0_16 = arith.constant 0 : index
    %6 = vector.load %arg4[%c0_14, %c2_15, %c0_16] : memref<1x4x128xf32, #tpu.memory_space<vmem>>, vector<1x1x128xf32>
    %c0_17 = arith.constant 0 : index
    %c3_18 = arith.constant 3 : index
    %c0_19 = arith.constant 0 : index
    %7 = vector.load %arg4[%c0_17, %c3_18, %c0_19] : memref<1x4x128xf32, #tpu.memory_space<vmem>>, vector<1x1x128xf32>
    %8 = arith.subf %2, %0 : vector<1x1x128xf32>
    %cst = arith.constant 1.000000e+00 : f32
    %9 = vector.broadcast %cst : f32 to vector<1x1x128xf32>
    %10 = arith.addf %8, %9 : vector<1x1x128xf32>
    %11 = arith.subf %3, %1 : vector<1x1x128xf32>
    %cst_20 = arith.constant 1.000000e+00 : f32
    %12 = vector.broadcast %cst_20 : f32 to vector<1x1x128xf32>
    %13 = arith.addf %11, %12 : vector<1x1x128xf32>
    %cst_21 = arith.constant 5.000000e-01 : f32
    %14 = vector.broadcast %cst_21 : f32 to vector<1x1x128xf32>
    %15 = arith.mulf %14, %10 : vector<1x1x128xf32>
    %16 = arith.addf %0, %15 : vector<1x1x128xf32>
    %cst_22 = arith.constant 5.000000e-01 : f32
    %17 = vector.broadcast %cst_22 : f32 to vector<1x1x128xf32>
    %18 = arith.mulf %17, %13 : vector<1x1x128xf32>
    %19 = arith.addf %1, %18 : vector<1x1x128xf32>
    %20 = arith.mulf %4, %10 : vector<1x1x128xf32>
    %21 = arith.addf %20, %16 : vector<1x1x128xf32>
    %22 = arith.mulf %5, %13 : vector<1x1x128xf32>
    %23 = arith.addf %22, %19 : vector<1x1x128xf32>
    %24 = math.exp %6 : vector<1x1x128xf32>
    %25 = arith.mulf %24, %10 : vector<1x1x128xf32>
    %26 = math.exp %7 : vector<1x1x128xf32>
    %27 = arith.mulf %26, %13 : vector<1x1x128xf32>
    %c0_23 = arith.constant 0 : index
    %28 = memref.load %arg2[%c0_23] : memref<2xf32, #tpu.memory_space<smem>>
    %c1_24 = arith.constant 1 : index
    %29 = memref.load %arg2[%c1_24] : memref<2xf32, #tpu.memory_space<smem>>
    %cst_25 = arith.constant 5.000000e-01 : f32
    %30 = vector.broadcast %cst_25 : f32 to vector<1x1x128xf32>
    %31 = arith.mulf %30, %25 : vector<1x1x128xf32>
    %32 = arith.subf %21, %31 : vector<1x1x128xf32>
    %cst_26 = arith.constant 1.000000e+00 : f32
    %33 = arith.subf %29, %cst_26 : f32
    %cst_27 = arith.constant 0.000000e+00 : f32
    %34 = vector.broadcast %cst_27 : f32 to vector<1x1x128xf32>
    %35 = arith.maximumf %34, %32 : vector<1x1x128xf32>
    %36 = vector.broadcast %33 : f32 to vector<1x1x128xf32>
    %37 = arith.minimumf %36, %35 : vector<1x1x128xf32>
    %cst_28 = arith.constant 5.000000e-01 : f32
    %38 = vector.broadcast %cst_28 : f32 to vector<1x1x128xf32>
    %39 = arith.mulf %38, %27 : vector<1x1x128xf32>
    %40 = arith.subf %23, %39 : vector<1x1x128xf32>
    %cst_29 = arith.constant 1.000000e+00 : f32
    %41 = arith.subf %28, %cst_29 : f32
    %cst_30 = arith.constant 0.000000e+00 : f32
    %42 = vector.broadcast %cst_30 : f32 to vector<1x1x128xf32>
    %43 = arith.maximumf %42, %40 : vector<1x1x128xf32>
    %44 = vector.broadcast %41 : f32 to vector<1x1x128xf32>
    %45 = arith.minimumf %44, %43 : vector<1x1x128xf32>
    %cst_31 = arith.constant 5.000000e-01 : f32
    %46 = vector.broadcast %cst_31 : f32 to vector<1x1x128xf32>
    %47 = arith.mulf %46, %25 : vector<1x1x128xf32>
    %48 = arith.addf %21, %47 : vector<1x1x128xf32>
    %cst_32 = arith.constant 1.000000e+00 : f32
    %49 = arith.subf %29, %cst_32 : f32
    %cst_33 = arith.constant 0.000000e+00 : f32
    %50 = vector.broadcast %cst_33 : f32 to vector<1x1x128xf32>
    %51 = arith.maximumf %50, %48 : vector<1x1x128xf32>
    %52 = vector.broadcast %49 : f32 to vector<1x1x128xf32>
    %53 = arith.minimumf %52, %51 : vector<1x1x128xf32>
    %cst_34 = arith.constant 5.000000e-01 : f32
    %54 = vector.broadcast %cst_34 : f32 to vector<1x1x128xf32>
    %55 = arith.mulf %54, %27 : vector<1x1x128xf32>
    %56 = arith.addf %23, %55 : vector<1x1x128xf32>
    %cst_35 = arith.constant 1.000000e+00 : f32
    %57 = arith.subf %28, %cst_35 : f32
    %cst_36 = arith.constant 0.000000e+00 : f32
    %58 = vector.broadcast %cst_36 : f32 to vector<1x1x128xf32>
    %59 = arith.maximumf %58, %56 : vector<1x1x128xf32>
    %60 = vector.broadcast %57 : f32 to vector<1x1x128xf32>
    %61 = arith.minimumf %60, %59 : vector<1x1x128xf32>
    %c0_37 = arith.constant 0 : index
    %c0_38 = arith.constant 0 : index
    %c0_39 = arith.constant 0 : index
    %62 = vector.load %arg5[%c0_37, %c0_38, %c0_39] : memref<1x4x128xf32, #tpu.memory_space<vmem>>, vector<1x1x128xf32>
    tpu.vector_store %arg5[%c0_37, %c0_38, %c0_39], %37 {strides = array<i32>} : memref<1x4x128xf32, #tpu.memory_space<vmem>>, vector<1x1x128xf32>,
    %c0_40 = arith.constant 0 : index
    %c1_41 = arith.constant 1 : index
    %c0_42 = arith.constant 0 : index
    %63 = vector.load %arg5[%c0_40, %c1_41, %c0_42] : memref<1x4x128xf32, #tpu.memory_space<vmem>>, vector<1x1x128xf32>
    tpu.vector_store %arg5[%c0_40, %c1_41, %c0_42], %45 {strides = array<i32>} : memref<1x4x128xf32, #tpu.memory_space<vmem>>, vector<1x1x128xf32>,
    %c0_43 = arith.constant 0 : index
    %c2_44 = arith.constant 2 : index
    %c0_45 = arith.constant 0 : index
    %64 = vector.load %arg5[%c0_43, %c2_44, %c0_45] : memref<1x4x128xf32, #tpu.memory_space<vmem>>, vector<1x1x128xf32>
    tpu.vector_store %arg5[%c0_43, %c2_44, %c0_45], %53 {strides = array<i32>} : memref<1x4x128xf32, #tpu.memory_space<vmem>>, vector<1x1x128xf32>,
    %c0_46 = arith.constant 0 : index
    %c3_47 = arith.constant 3 : index
    %c0_48 = arith.constant 0 : index
    %65 = vector.load %arg5[%c0_46, %c3_47, %c0_48] : memref<1x4x128xf32, #tpu.memory_space<vmem>>, vector<1x1x128xf32>
    tpu.vector_store %arg5[%c0_46, %c3_47, %c0_48], %61 {strides = array<i32>} : memref<1x4x128xf32, #tpu.memory_space<vmem>>, vector<1x1x128xf32>,
    return
  }
  func.func @transform_0(%arg0: i32, %arg1: i32) -> i32 {
    %c0_i32 = arith.constant 0 : i32
    %c0_i32_0 = arith.constant 0 : i32
    return %c0_i32 : i32
  }
  func.func @transform_1(%arg0: i32, %arg1: i32) -> (i32, i32, i32) {
    %c0_i32 = arith.constant 0 : i32
    %c0_i32_0 = arith.constant 0 : i32
    return %arg0, %c0_i32, %arg1 : i32, i32, i32
  }
  func.func @transform_2(%arg0: i32, %arg1: i32) -> (i32, i32, i32) {
    %c0_i32 = arith.constant 0 : i32
    %c0_i32_0 = arith.constant 0 : i32
    return %arg0, %c0_i32, %arg1 : i32, i32, i32
  }
  func.func @transform_3(%arg0: i32, %arg1: i32) -> (i32, i32, i32) {
    %c0_i32 = arith.constant 0 : i32
    %c0_i32_0 = arith.constant 0 : i32
    return %arg0, %c0_i32, %arg1 : i32, i32, i32
  }
}

</mosaic_0001>

<llo_original>
// kernel: tpu_custom_call.1
$region0: #{tpu_custom_call.1}
  #allocation0 [shape = 'u32[]', space=smem, size = 0x4, offset = 0x4, fixed_abs, tag = 'smem constant byte address 0x4 - core index']
  #allocation1 [shape = 'u32[144,128]{1,0:T(1,128)}', space=vmem, size = 0x12000, scoped, tag = 'internal scratch']
  %s0 = inlined_call_operand.hbm [shape: f32[2], index: 0, kind: input, shape index: {}]
  %s1 = inlined_call_operand.hbm [shape: f32[2,4,128], index: 1, kind: input, shape index: {}]
  %s2 = inlined_call_operand.hbm [shape: f32[2,4,128], index: 2, kind: input, shape index: {}]
  %s3 = inlined_call_operand.hbm [shape: f32[2,4,128], index: 3, kind: output, shape index: {}]
  %s4 = sld [smem:[#allocation0]]
  $region57: #{tpu_custom_call.1} parent=0
    _
  %s6 = ssub.s32 1, %s4
  %s7 = scalar_select 0, %s6, %s4
  $region1: #{tpu_custom_call.1} parent=0
    #allocation2 [shape = 'u8[512]{0}', space=smem, size = 0x200, scoped, tag = 'input window, operand 0, single buffered']
    #allocation3 [shape = 's32[2]{0}', space=sflag, size = 0x8, scoped, tag = 'scoped memory for tpu_custom_call.1']
    #allocation4 [shape = 's32[2]{0}', space=sflag, size = 0x8, scoped, tag = 'scoped memory for tpu_custom_call.1']
    #allocation5 [shape = 's32[2]{0}', space=sflag, size = 0x8, scoped, tag = 'scoped memory for tpu_custom_call.1']
    #allocation6 [shape = 'u8[4096]{0}', space=vmem, size = 0x1000, scoped, tag = 'input window, operand 1']
    #allocation7 [shape = 'u8[4096]{0}', space=vmem, size = 0x1000, scoped, tag = 'input window, operand 2']
    #allocation8 [shape = 's32[2]{0}', space=sflag, size = 0x8, scoped, tag = 'scoped memory for tpu_custom_call.1']
    #allocation9 [shape = 'u8[4096]{0}', space=vmem, size = 0x1000, scoped, tag = 'output window, operand 0']
    %8 = vsyncpa [#allocation5], 0
    %9 = vsyncpa [#allocation3], 0
    %s10 = scalar_lea.sflag [#allocation3], 1
    %11 = vsyncpa %s10, 0
    %12 = vsyncpa [#allocation8], 0
    %s13 = scalar_lea.sflag [#allocation8], 1
    %14 = vsyncpa %s13, 0
    %15 = vsyncpa [#allocation4], 0
    %s16 = scalar_lea.sflag [#allocation4], 1
    %17 = vsyncpa %s16, 0
    loop: start=0, step=1, limit=4
    $region2: #{tpu_custom_call.1} parent=1 // loop_pre_header
      _
    $region3: #{tpu_custom_call.1} parent=1 // loop_header
      %s19 = sphi 0, %s23
      %p20 = scmp.ge.s32.totalorder %s19, 4
      %s26 = sphi 0, %s38
      %s27 = sphi 0, %s34
      %s28 = sphi 0, %s26
      %s29 = sphi 0, %s27
      %s30 = sphi 0, %s28
      %s31 = sphi 0, %s29
      %s39 = sphi 0, %s39
      %s41 = sphi 0, %s39
      %s42 = sphi 0, %s41
      %s56 = sphi 0, %s42
      %s64 = sphi 0, %s66
      %s67 = sphi 0, %s64
      %s68 = sphi 0, %s67
      %s84 = sphi 0, %s68
      %s92 = sphi 0, %s94
      %s95 = sphi 0, %s92
      %s96 = sphi 0, %s95
      %s112 = sphi 0, %s96
      %s120 = sphi 0, %s122
      %s123 = sphi 0, %s120
      %s124 = sphi 0, %s123
      %s140 = sphi 0, %s124
    $region4: #{tpu_custom_call.1} parent=1 // loop_header_branch
      %22 = sbr.rel (%p20) target = $region8
    $region5: #{tpu_custom_call.1} parent=1 // loop_body
      %s24 = ssub.s32 %s19, 1
      %s25 = ssub.s32 %s19, 2
      %s32 = sadd.s32 1, %s27
      %p33 = scmp.ge.s32.totalorder %s32, 1
      %s34 = scalar_select %p33, 0, %s32
      %s35 = sadd.s32 1, %s26
      %s36 = scalar_select %p33, %s35, %s26
      %p37 = scmp.ge.s32.totalorder %s36, 2
      %s38 = scalar_select %p37, 0, %s36
      %s40 = sadd.s32 %s39, 1
      %p43 = scmp.eq.s32.totalorder %s19, 1
      %p44 = scmp.ne.s32.totalorder %s39, %s41
      %p45 = scmp.eq.s32.totalorder %s19, 0
      %p46 = por %p44, %p45
      %p47 = scmp.ne.s32.totalorder %s39, %s41
      %p48 = scmp.eq.s32.totalorder %s24, 1
      %p49 = por %p47, %p48
      %p50 = scmp.ne.s32.totalorder %s41, %s42
      %p51 = scmp.eq.s32.totalorder %s24, 0
      %p52 = por %p50, %p51
      %p53 = scmp.ne.s32.totalorder %s41, %s42
      %p54 = scmp.eq.s32.totalorder %s25, 1
      %p55 = por %p53, %p54
      %p57 = scmp.ne.s32.totalorder %s42, %s56
      %p58 = scmp.eq.s32.totalorder %s25, 0
      %p59 = por %p57, %p58
      %s60 = ssub.s32 %s26, %s38
      %s61 = ssub.s32 %s27, %s34
      %s62 = sor.u32 %s60, %s61
      %p63 = scmp.eq.s32.totalorder %s62, 0
      %s65 = sadd.s32 %s64, 1
      %s66 = scalar_select %p63, %s64, %s65
      %p69 = pneg %p63
      %p70 = scmp.eq.s32.totalorder %s19, 1
      %p71 = por %p69, %p70
      %p72 = scmp.ne.s32.totalorder %s64, %s67
      %p73 = scmp.eq.s32.totalorder %s19, 0
      %p74 = por %p72, %p73
      %p75 = scmp.ne.s32.totalorder %s64, %s67
      %p76 = scmp.eq.s32.totalorder %s24, 1
      %p77 = por %p75, %p76
      %p78 = scmp.ne.s32.totalorder %s67, %s68
      %p79 = scmp.eq.s32.totalorder %s24, 0
      %p80 = por %p78, %p79
      %p81 = scmp.ne.s32.totalorder %s67, %s68
      %p82 = scmp.eq.s32.totalorder %s25, 1
      %p83 = por %p81, %p82
      %p85 = scmp.ne.s32.totalorder %s68, %s84
      %p86 = scmp.eq.s32.totalorder %s25, 0
      %p87 = por %p85, %p86
      %s88 = ssub.s32 %s26, %s38
      %s89 = ssub.s32 %s27, %s34
      %s90 = sor.u32 %s88, %s89
      %p91 = scmp.eq.s32.totalorder %s90, 0
      %s93 = sadd.s32 %s92, 1
      %s94 = scalar_select %p91, %s92, %s93
      %p97 = pneg %p91
      %p98 = scmp.eq.s32.totalorder %s19, 1
      %p99 = por %p97, %p98
      %p100 = scmp.ne.s32.totalorder %s92, %s95
      %p101 = scmp.eq.s32.totalorder %s19, 0
      %p102 = por %p100, %p101
      %p103 = scmp.ne.s32.totalorder %s92, %s95
      %p104 = scmp.eq.s32.totalorder %s24, 1
      %p105 = por %p103, %p104
      %p106 = scmp.ne.s32.totalorder %s95, %s96
      %p107 = scmp.eq.s32.totalorder %s24, 0
      %p108 = por %p106, %p107
      %p109 = scmp.ne.s32.totalorder %s95, %s96
      %p110 = scmp.eq.s32.totalorder %s25, 1
      %p111 = por %p109, %p110
      %p113 = scmp.ne.s32.totalorder %s96, %s112
      %p114 = scmp.eq.s32.totalorder %s25, 0
      %p115 = por %p113, %p114
      %s116 = ssub.s32 %s26, %s38
      %s117 = ssub.s32 %s27, %s34
      %s118 = sor.u32 %s116, %s117
      %p119 = scmp.eq.s32.totalorder %s118, 0
      %s121 = sadd.s32 %s120, 1
      %s122 = scalar_select %p119, %s120, %s121
      %p125 = pneg %p119
      %p126 = scmp.eq.s32.totalorder %s19, 1
      %p127 = por %p125, %p126
      %p128 = scmp.ne.s32.totalorder %s120, %s123
      %p129 = scmp.eq.s32.totalorder %s19, 0
      %p130 = por %p128, %p129
      %p131 = scmp.ne.s32.totalorder %s120, %s123
      %p132 = scmp.eq.s32.totalorder %s24, 1
      %p133 = por %p131, %p132
      %p134 = scmp.ne.s32.totalorder %s123, %s124
      %p135 = scmp.eq.s32.totalorder %s24, 0
      %p136 = por %p134, %p135
      %p137 = scmp.ne.s32.totalorder %s123, %s124
      %p138 = scmp.eq.s32.totalorder %s25, 1
      %p139 = por %p137, %p138
      %p141 = scmp.ne.s32.totalorder %s124, %s140
      %p142 = scmp.eq.s32.totalorder %s25, 0
      %p143 = por %p141, %p142
      %p144 = scmp.le.s32.totalorder 1, %s19
      %p145 = scmp.lt.s32.totalorder %s19, 3
      %p146 = pnand %p144, %p145
      %p147 = pneg %p146
      // Predicated region
      $region9: #{tpu_custom_call.1} parent=5 // pred_check
        _
      $region10: #{tpu_custom_call.1} parent=5 // pred_check_branch
        %149 = sbr.rel (%p146) target = $region12
      $region11: #{tpu_custom_call.1} parent=5 // pred_region
        %s150 = ssub.s32 %s19, 1
        // Predicated region
        $region13: #{tpu_custom_call.1} parent=11 // pred_check
          %p151 = pneg %p52
        $region14: #{tpu_custom_call.1} parent=11 // pred_check_branch
          %153 = sbr.rel (%p151) target = $region16
        $region15: #{tpu_custom_call.1} parent=11 // pred_region
          %s155 = ssub.s32 16, 16
          %156 = vsyncadd [#allocation5], %s155
          %159 = dma.hbm_to_smem %s0, 16, [#allocation2], [#allocation5]
        $region16: #{tpu_custom_call.1} parent=11 // pred_fallthru
          _
      $region12: #{tpu_custom_call.1} parent=5 // pred_fallthru
        _
      %p160 = scmp.lt.s32.totalorder %s19, 2
      // Predicated region
      $region17: #{tpu_custom_call.1} parent=5 // pred_check
        %p161 = pneg %p160
      $region18: #{tpu_custom_call.1} parent=5 // pred_check_branch
        %163 = sbr.rel (%p161) target = $region20
      $region19: #{tpu_custom_call.1} parent=5 // pred_region
        // Predicated region
        $region21: #{tpu_custom_call.1} parent=19 // pred_check
          %p164 = pneg %p74
        $region22: #{tpu_custom_call.1} parent=19 // pred_check_branch
          %166 = sbr.rel (%p164) target = $region24
        $region23: #{tpu_custom_call.1} parent=19 // pred_region
          %s167 = sand.u32 %s64, 1
          %s168 = scalar_lea.sflag [#allocation3], %s167
          %s169 = sand.u32 %s64, 1
          %s170 = smul.addr %s169, 4
          %s171 = scalar_lea.vmem [#allocation6], %s170
          %s173 = ssub.s32 64, 64
          %174 = vsyncadd %s168, %s173
          %s175 = sadd.s32 %s27, %s26
          %s176 = smul.addr %s175, 64
          %s177 = scalar_lea.hbm %s1, %s176
          %s179 = sshll.u32 %s171, 4
          %s180 = int_to_ptr.vmem [resolvable:$true] %s179
          %182 = dma.hbm_to_vmem [thread:$0]  %s177, 64, %s180, %s168
        $region24: #{tpu_custom_call.1} parent=19 // pred_fallthru
          _
        // Predicated region
        $region25: #{tpu_custom_call.1} parent=19 // pred_check
          %p183 = pneg %p102
        $region26: #{tpu_custom_call.1} parent=19 // pred_check_branch
          %185 = sbr.rel (%p183) target = $region28
        $region27: #{tpu_custom_call.1} parent=19 // pred_region
          %s186 = sand.u32 %s92, 1
          %s187 = scalar_lea.sflag [#allocation8], %s186
          %s188 = sand.u32 %s92, 1
          %s189 = smul.addr %s188, 4
          %s190 = scalar_lea.vmem [#allocation7], %s189
          %s192 = ssub.s32 64, 64
          %193 = vsyncadd %s187, %s192
          %s194 = sadd.s32 %s27, %s26
          %s195 = smul.addr %s194, 64
          %s196 = scalar_lea.hbm %s2, %s195
          %s198 = sshll.u32 %s190, 4
          %s199 = int_to_ptr.vmem [resolvable:$true] %s198
          %201 = dma.hbm_to_vmem [thread:$0]  %s196, 64, %s199, %s187
        $region28: #{tpu_custom_call.1} parent=19 // pred_fallthru
          _
      $region20: #{tpu_custom_call.1} parent=5 // pred_fallthru
        _
      %p202 = scmp.le.s32.totalorder 1, %s19
      %p203 = scmp.lt.s32.totalorder %s19, 3
      %p204 = pnand %p202, %p203
      %p205 = pneg %p204
      // Predicated region
      $region29: #{tpu_custom_call.1} parent=5 // pred_check
        _
      $region30: #{tpu_custom_call.1} parent=5 // pred_check_branch
        %207 = sbr.rel (%p204) target = $region32
      $region31: #{tpu_custom_call.1} parent=5 // pred_region
        %s208 = ssub.s32 %s19, 1
        // Predicated region
        $region33: #{tpu_custom_call.1} parent=31 // pred_check
          %p209 = pneg %p52
        $region34: #{tpu_custom_call.1} parent=31 // pred_check_branch
          %211 = sbr.rel (%p209) target = $region36
        $region35: #{tpu_custom_call.1} parent=31 // pred_region
          %212 = dma.done [#allocation5], 16
        $region36: #{tpu_custom_call.1} parent=31 // pred_fallthru
          _
        %s213 = sand.u32 %s67, 1
        %s214 = scalar_lea.sflag [#allocation3], %s213
        %s215 = sand.u32 %s67, 1
        %s216 = smul.addr %s215, 4
        %s217 = scalar_lea.vmem [#allocation6], %s216
        // Predicated region
        $region37: #{tpu_custom_call.1} parent=31 // pred_check
          %p218 = pneg %p80
        $region38: #{tpu_custom_call.1} parent=31 // pred_check_branch
          %220 = sbr.rel (%p218) target = $region40
        $region39: #{tpu_custom_call.1} parent=31 // pred_region
          %221 = dma.done %s214, 64
        $region40: #{tpu_custom_call.1} parent=31 // pred_fallthru
          _
        %s222 = sand.u32 %s95, 1
        %s223 = scalar_lea.sflag [#allocation8], %s222
        %s224 = sand.u32 %s95, 1
        %s225 = smul.addr %s224, 4
        %s226 = scalar_lea.vmem [#allocation7], %s225
        // Predicated region
        $region41: #{tpu_custom_call.1} parent=31 // pred_check
          %p227 = pneg %p108
        $region42: #{tpu_custom_call.1} parent=31 // pred_check_branch
          %229 = sbr.rel (%p227) target = $region44
        $region43: #{tpu_custom_call.1} parent=31 // pred_region
          %230 = dma.done %s223, 64
        $region44: #{tpu_custom_call.1} parent=31 // pred_fallthru
          _
        %231 = sfence
        %p232 = pneg %p52
        %p233 = pneg %p49
        %s234 = sand.u32 %s67, 1
        %s235 = scalar_lea.sflag [#allocation3], %s234
        %s236 = sand.u32 %s67, 1
        %s237 = smul.addr %s236, 4
        %s238 = scalar_lea.vmem [#allocation6], %s237
        %p239 = pneg %p80
        %p240 = pneg %p77
        %s241 = sand.u32 %s95, 1
        %s242 = scalar_lea.sflag [#allocation8], %s241
        %s243 = sand.u32 %s95, 1
        %s244 = smul.addr %s243, 4
        %s245 = scalar_lea.vmem [#allocation7], %s244
        %p246 = pneg %p108
        %p247 = pneg %p105
        %p248 = pneg %p136
        %p249 = pneg %p133
        %s250 = sand.u32 %s123, 1
        %s251 = scalar_lea.sflag [#allocation4], %s250
        %s252 = sand.u32 %s123, 1
        %s253 = smul.addr %s252, 4
        %s254 = scalar_lea.vmem [#allocation9], %s253
        %v255 = vld [vmem:[%s217] sm:$0x1]
        %v256 = vld [vmem:[%s217 + $0x1] sm:$0x1]
        %v257 = vld [vmem:[%s217 + $0x2] sm:$0x1]
        %v258 = vld [vmem:[%s217 + $0x3] sm:$0x1]
        %v259 = vld [vmem:[%s226] sm:$0x1]
        %v260 = vld [vmem:[%s226 + $0x1] sm:$0x1]
        %v261 = vld [vmem:[%s226 + $0x2] sm:$0x1]
        %v262 = vld [vmem:[%s226 + $0x3] sm:$0x1]
        %v263 = vsub.f32 %v257, %v255
        %v264 = vadd.f32 %v263, 1.0
        %v265 = vsub.f32 %v258, %v256
        %v266 = vadd.f32 %v265, 1.0
        %v267 = vmul.f32 %v264, 0.5
        %v268 = vadd.f32 %v255, %v267
        %v269 = vmul.f32 %v266, 0.5
        %v270 = vadd.f32 %v256, %v269
        %v271 = vmul.f32 %v259, %v264
        %v272 = vadd.f32 %v271, %v268
        %v273 = vmul.f32 %v260, %v266
        %v274 = vadd.f32 %v273, %v270
        %v275 = vmul.f32 %v261, 1.442695
        %v276 = vpow.pop %v275
        %v277 = vmul.f32 %v276, %v264
        %v278 = vmul.f32 %v262, 1.442695
        %v279 = vpow.pop %v278
        %v280 = vmul.f32 %v279, %v266
        %s281 = sld [smem:[#allocation2]]
        %s282 = sld [smem:[#allocation2 + $0x1]]
        %v283 = vmul.f32 %v277, 0.5
        %v284 = vsub.f32 %v272, %v283
        %s285 = ssub.f32 %s282, 1.0
        %v286 = vmax.f32 %v284, 0.0
        %v287 = vstv %s285
        %v288 = vmin.f32 %v287, %v286
        %v289 = vmul.f32 %v280, 0.5
        %v290 = vsub.f32 %v274, %v289
        %s291 = ssub.f32 %s281, 1.0
        %v292 = vmax.f32 %v290, 0.0
        %v293 = vstv %s291
        %v294 = vmin.f32 %v293, %v292
        %v295 = vadd.f32 %v272, %v283
        %v296 = vmax.f32 %v295, 0.0
        %v297 = vmin.f32 %v287, %v296
        %v298 = vadd.f32 %v274, %v289
        %v299 = vmax.f32 %v298, 0.0
        %v300 = vmin.f32 %v293, %v299
        %301 = vst [vmem:[%s254] sm:$0x1] %v288
        %302 = vst [vmem:[%s254 + $0x1] sm:$0x1] %v294
        %303 = vst [vmem:[%s254 + $0x2] sm:$0x1] %v297
        %304 = vst [vmem:[%s254 + $0x3] sm:$0x1] %v300
        %s305 = sand.u32 %s123, 1
        %s306 = scalar_lea.sflag [#allocation4], %s305
        %s307 = sand.u32 %s123, 1
        %s308 = smul.addr %s307, 4
        %s309 = scalar_lea.vmem [#allocation9], %s308
        // Predicated region
        $region45: #{tpu_custom_call.1} parent=31 // pred_check
          %p310 = pneg %p133
        $region46: #{tpu_custom_call.1} parent=31 // pred_check_branch
          %312 = sbr.rel (%p310) target = $region48
        $region47: #{tpu_custom_call.1} parent=31 // pred_region
          %s314 = ssub.s32 64, 64
          %315 = vsyncadd %s306, %s314
          %s316 = sadd.s32 %s29, %s28
          %s317 = smul.addr %s316, 64
          %s318 = scalar_lea.hbm %s3, %s317
          %s320 = sshll.u32 %s309, 4
          %s321 = int_to_ptr.vmem [resolvable:$true] %s320
          %323 = dma.vmem_to_hbm [thread:$0]  %s321, 64, %s318, %s306
        $region48: #{tpu_custom_call.1} parent=31 // pred_fallthru
          _
      $region32: #{tpu_custom_call.1} parent=5 // pred_fallthru
        _
      %p324 = scmp.le.s32.totalorder 2, %s19
      // Predicated region
      $region49: #{tpu_custom_call.1} parent=5 // pred_check
        %p325 = pneg %p324
      $region50: #{tpu_custom_call.1} parent=5 // pred_check_branch
        %327 = sbr.rel (%p325) target = $region52
      $region51: #{tpu_custom_call.1} parent=5 // pred_region
        %s328 = ssub.s32 %s19, 2
        // Predicated region
        $region53: #{tpu_custom_call.1} parent=51 // pred_check
          %p329 = pneg %p139
        $region54: #{tpu_custom_call.1} parent=51 // pred_check_branch
          %331 = sbr.rel (%p329) target = $region56
        $region55: #{tpu_custom_call.1} parent=51 // pred_region
          %s332 = sand.u32 %s124, 1
          %s333 = scalar_lea.sflag [#allocation4], %s332
          %s334 = sand.u32 %s124, 1
          %s335 = smul.addr %s334, 4
          %s336 = scalar_lea.vmem [#allocation9], %s335
          %337 = dma.done %s333, 64
        $region56: #{tpu_custom_call.1} parent=51 // pred_fallthru
          _
      $region52: #{tpu_custom_call.1} parent=5 // pred_fallthru
        _
    $region6: #{tpu_custom_call.1} parent=1 // loop_footer
      %s23 = sadd.s32 1, %s19
    $region7: #{tpu_custom_call.1} parent=1 // loop_footer_branch
      %18 = sbr.rel target = $region3
    $region8: #{tpu_custom_call.1} parent=1 // loop_exit
      _
    %338 = vsyncpa [#allocation3], 1
    %s339 = scalar_lea.sflag [#allocation3], 1
    %340 = vsyncpa %s339, 1
    %341 = vsyncpa [#allocation8], 1
    %s342 = scalar_lea.sflag [#allocation8], 1
    %343 = vsyncpa %s342, 1
    %344 = vsyncpa [#allocation4], 1
    %s345 = scalar_lea.sflag [#allocation4], 1
    %346 = vsyncpa %s345, 1
    %347 = vsyncpa [#allocation5], 1
    %s348 = scalar_lea.sflag [#allocation5], 1
    %349 = vsyncpa %s348, 1

</llo_original>
